<compile_context>
chip_gen: v5e
topology: v5e:2x2
jax: 0.10.0
libtpu: 0.0.40
codegen_flags: <defaults>
</compile_context>

<pallas_src>
import jax
import jax.numpy as jnp
from jax.experimental import pallas as pl
from jax.experimental.pallas import tpu as pltpu


_LANE = 128                  # last blocked dim must be a 128 multiple
_MAX_TILE_ROWS = 128 * 1024  # 512 KiB of f32 per ladj tile -- tiny vs. VMEM everywhere


def _round_up(x: int, m: int) -> int:
    return ((x + m - 1) // m) * m


def _forward_and_ladj_kernel(x_hbm_ref, y_hbm_ref, ladj_ref):
    # forward: identity.  y aliases x's HBM buffer, so no data movement is
    # needed -- both raw HBM refs are intentionally untouched (no DMA issued).
    del x_hbm_ref, y_hbm_ref
    # ladj of the identity is exactly zero per sample.  Lane-dense (1, tile_n)
    # slab -> unmasked vector stores, pure VPU zero fill.
    ladj_ref[...] = jnp.zeros_like(ladj_ref)


def forward_and_ladj(x: jax.Array):
    """Pallas equivalent of Transform.forward_and_ladj(x) -> (y, ladj)."""
    n, d = x.shape

    # ladj is laid out lane-dense as (1, n_pad); pad the batch axis up to a
    # lane multiple so any n (including non-128-divisible sizes) gets legal,
    # small tiles instead of one oversized block.
    n_pad = _round_up(max(n, 1), _LANE)
    tile_n = min(n_pad, _MAX_TILE_ROWS)
    n_pad = _round_up(n_pad, tile_n)
    grid = (n_pad // tile_n,)

    y, ladj_pad = pl.pallas_call(
        _forward_and_ladj_kernel,
        out_shape=(
            jax.ShapeDtypeStruct((n, d), x.dtype),          # y (aliases x)
            jax.ShapeDtypeStruct((1, n_pad), jnp.float32),  # ladj, lane-dense
        ),
        grid=grid,
        in_specs=[pl.BlockSpec(memory_space=pl.ANY)],        # raw HBM ref, no auto-DMA
        out_specs=(
            pl.BlockSpec(memory_space=pl.ANY),               # raw HBM ref, no auto-DMA
            pl.BlockSpec((1, tile_n), lambda i: (0, i)),
        ),
        # Identity forward: y reuses x's buffer.  Zero-copy when x is donated;
        # otherwise XLA makes one defensive copy (still no kernel traffic).
        input_output_aliases={0: 0},
        compiler_params=pltpu.CompilerParams(
            dimension_semantics=("parallel",),
        ),
    )(x)

    return y, ladj_pad[0, :n]


def inverse_and_ladj(y: jax.Array):
    """Pallas equivalent of Transform.inverse_and_ladj(y) -> (x, -ladj)."""
    x, ladj = forward_and_ladj(y)  # the identity is its own inverse
    return x, -ladj


if __name__ == "__main__":
    key = jax.random.PRNGKey(0)
    k0, k1 = jax.random.split(key)

    # Lane-aligned case: 64 samples x 128-dim coordinates.
    n, d = 64, 128
    x = jax.random.normal(k0, (n, d), dtype=jnp.float32)
    y, ladj = forward_and_ladj(x)
    jax.block_until_ready((y, ladj))
    assert y.shape == x.shape and ladj.shape == (n,)
    assert jnp.allclose(y, x)
    assert jnp.allclose(ladj, jnp.zeros((n,), jnp.float32))

    xi, ladj_inv = inverse_and_ladj(y)
    jax.block_until_ready((xi, ladj_inv))
    assert jnp.allclose(xi, x)
    assert jnp.allclose(ladj_inv, jnp.zeros((n,), jnp.float32))

    # Awkward batch size (exercises the padded lane-dense ladj path).
    n2, d2 = 200, 48
    x2 = jax.random.normal(k1, (n2, d2), dtype=jnp.float32)
    y2, ladj2 = forward_and_ladj(x2)
    jax.block_until_ready((y2, ladj2))
    assert y2.shape == x2.shape and ladj2.shape == (n2,)
    assert jnp.allclose(y2, x2)
    assert jnp.allclose(ladj2, jnp.zeros((n2,), jnp.float32))

    print("KERNEL_OK")
</pallas_src>

<mosaic_0001>
module attributes {stable_mosaic.version = 11 : i64} {
  func.func @_forward_and_ladj_kernel(%arg0: i32, %arg1: memref<64x128xf32, #tpu.memory_space<any>>, %arg2: memref<64x128xf32, #tpu.memory_space<any>>, %arg3: memref<1x128xf32, #tpu.memory_space<vmem>>) attributes {dimension_semantics = [#tpu.dimension_semantics<parallel>], iteration_bounds = array<i64: 1>, scalar_prefetch = 0 : i64, scratch_operands = 0 : i64, tpu.core_type = #tpu.core_type<tc>, window_params = [{}, {}, {transform_indices = @transform_2, window_bounds = array<i64: 1, 128>}]} {
    %cst = arith.constant 0.000000e+00 : f32
    %0 = vector.broadcast %cst : f32 to vector<1x128xf32>
    %c0 = arith.constant 0 : index
    %c0_0 = arith.constant 0 : index
    %1 = vector.load %arg3[%c0, %c0_0] : memref<1x128xf32, #tpu.memory_space<vmem>>, vector<1x128xf32>
    tpu.vector_store %arg3[%c0, %c0_0], %0 {strides = array<i32>} : memref<1x128xf32, #tpu.memory_space<vmem>>, vector<1x128xf32>,
    return
  }
  func.func @transform_2(%arg0: i32) -> (i32, i32) {
    %c0_i32 = arith.constant 0 : i32
    %c0_i32_0 = arith.constant 0 : i32
    return %c0_i32, %arg0 : i32, i32
  }
}

</mosaic_0001>

<llo_original>
// kernel: tpu_custom_call.1
$region0: #{tpu_custom_call.1}
  #allocation0 [shape = 'u32[]', space=smem, size = 0x4, offset = 0x4, fixed_abs, tag = 'smem constant byte address 0x4 - core index']
  #allocation1 [shape = 'u32[72,128]{1,0:T(1,128)}', space=vmem, size = 0x9000, scoped, tag = 'internal scratch']
  %s0 = inlined_call_operand.hbm [shape: f32[64,128], index: 0, kind: input, shape index: {}, may-alias: {0,1}]
  %s1 = inlined_call_operand.hbm [shape: f32[64,128], index: 1, kind: output, shape index: {0}, may-alias: {0,1}]
  %s2 = inlined_call_operand.hbm [shape: f32[1,128], index: 2, kind: output, shape index: {1}]
  %3 = xla_tuple %s1, %s2
  %s4 = sld [smem:[#allocation0]]
  $region10: #{tpu_custom_call.1} parent=0
    _
  %s6 = ssub.s32 1, %s4
  %s7 = scalar_select 0, %s6, %s4
  $region1: #{tpu_custom_call.1} parent=0
    #allocation2 [shape = 'u8[512]{0}', space=vmem, size = 0x400, scoped, tag = 'output window, operand 1, single buffered']
    #allocation3 [shape = 's32[1]{0}', space=sflag, size = 0x4, scoped, tag = 'scoped memory for tpu_custom_call.1']
    %8 = vsyncpa [#allocation3], 0
    %9 = vst [vmem:[#allocation2] sm:$0x1] 0.0
    // Predicated region
    $region2: #{tpu_custom_call.1} parent=1 // pred_check
      _
    $region3: #{tpu_custom_call.1} parent=1 // pred_check_branch
      %11 = sbr.rel (0) target = $region5
    $region4: #{tpu_custom_call.1} parent=1 // pred_region
      %13 = vsyncadd [#allocation3], 0
      %s15 = sshll.u32 [#allocation2], 4
      %s16 = int_to_ptr.vmem [resolvable:$true] %s15
      %s17 = sshll.u32 %s2, 4
      %s18 = int_to_ptr.hbm [resolvable:$true] %s17
      %20 = dma.vmem_to_hbm [thread:$0]  %s16, 16, %s18, [#allocation3]
    $region5: #{tpu_custom_call.1} parent=1 // pred_fallthru
      _
    // Predicated region
    $region6: #{tpu_custom_call.1} parent=1 // pred_check
      _
    $region7: #{tpu_custom_call.1} parent=1 // pred_check_branch
      %22 = sbr.rel (0) target = $region9
    $region8: #{tpu_custom_call.1} parent=1 // pred_region
      %24 = dma.done [#allocation3], 16
    $region9: #{tpu_custom_call.1} parent=1 // pred_fallthru
      _
    %25 = vsyncpa [#allocation3], 1

</llo_original>
